<compile_context>
chip_gen: v7x
topology: tpu7x:2x2x1
jax: 0.10.0
libtpu: 0.0.40
codegen_flags: <defaults>
</compile_context>

<pallas_src>
import functools

import jax
import jax.numpy as jnp
from jax import lax
from jax.experimental import pallas as pl
from jax.experimental.pallas import tpu as pltpu


# ------------------------------ Pallas kernel ------------------------------

def _bpp_kernel(f2_ref, f1_ref, o_ref, acc_ref, *, inv_hw, eps, nk):
    # f2_ref: (1, M, tk)   features2 tile (rows = M channels, lanes = spatial)
    # f1_ref: (1, tk, C)   features1 tile (rows = spatial, lanes = C channels)
    # o_ref : (1, M, C)    normalized output block (resident across the K axis)
    # acc_ref: (M, C) f32  VMEM accumulator scratch
    k = pl.program_id(1)

    @pl.when(k == 0)
    def _():
        acc_ref[...] = jnp.zeros_like(acc_ref)

    # MXU matmul tile, f32 accumulation.
    acc_ref[...] += jnp.dot(f2_ref[0], f1_ref[0],
                            preferred_element_type=jnp.float32)

    @pl.when(k == nk - 1)
    def _():
        g = acc_ref[...] * inv_hw                              # mean over H*W
        sgn = jnp.where(g > 0.0, 1.0, jnp.where(g < 0.0, -1.0, 0.0))
        y = sgn * jnp.sqrt(jnp.abs(g) + eps)                   # signed sqrt
        # L2 norm over the whole (M, C) block == over the flattened (M*C,) row.
        ssum = jnp.sum(jnp.sum(y * y, axis=1, keepdims=True),
                       axis=0, keepdims=True)                  # (1, 1)
        norm = jnp.sqrt(ssum)
        inv = 1.0 / jnp.maximum(norm, 1e-12)                   # F.normalize eps
        o_ref[0] = (y * inv).astype(o_ref.dtype)


# ------------------------------- glue (JAX) --------------------------------

def _bilinear_resize_ac(x, out_h, out_w):
    """F.upsample_bilinear == bilinear interpolation with align_corners=True."""
    B, C, H, W = x.shape
    if (H, W) == (out_h, out_w):
        return x

    def src(out_size, in_size):
        if out_size == 1:
            return jnp.zeros((out_size,), jnp.float32)
        return jnp.arange(out_size, dtype=jnp.float32) * (
            float(in_size - 1) / float(out_size - 1))

    ys, xs = src(out_h, H), src(out_w, W)
    y0 = jnp.floor(ys).astype(jnp.int32)
    y1 = jnp.minimum(y0 + 1, H - 1)
    x0 = jnp.floor(xs).astype(jnp.int32)
    x1 = jnp.minimum(x0 + 1, W - 1)
    wy = (ys - y0.astype(jnp.float32))[None, None, :, None]
    wx = (xs - x0.astype(jnp.float32))[None, None, None, :]
    rows = x[:, :, y0, :] * (1.0 - wy) + x[:, :, y1, :] * wy       # (B,C,out_h,W)
    out = rows[:, :, :, x0] * (1.0 - wx) + rows[:, :, :, x1] * wx  # (B,C,out_h,out_w)
    return out


def bpp_forward(features1, features2, epsilon, *, tk_max=256):
    """features1: (B, C, H, W), features2: (B, M, AH, AW) -> (B, M*C)."""
    B, C, H, W = features1.shape
    _, M, AH, AW = features2.shape
    if (AH, AW) != (H, W):
        features2 = _bilinear_resize_ac(features2, H, W)   # glue, not hot path

    HW = H * W
    f2m = features2.reshape(B, M, HW)                              # (B, M, HW)
    f1t = jnp.transpose(features1.reshape(B, C, HW), (0, 2, 1))    # (B, HW, C)

    # K tiling over the spatial contraction; tk is 128-lane aligned (tk_max is a
    # multiple of 128) or equal to the full extent, so the (8,128) rule holds.
    if HW <= tk_max:
        tk, hwp = HW, HW
    else:
        tk = tk_max
        hwp = ((HW + tk - 1) // tk) * tk
    if hwp != HW:
        f2m = jnp.pad(f2m, ((0, 0), (0, 0), (0, hwp - HW)))
        f1t = jnp.pad(f1t, ((0, 0), (0, hwp - HW), (0, 0)))
    nk = hwp // tk

    kernel = functools.partial(
        _bpp_kernel, inv_hw=1.0 / float(HW), eps=float(epsilon), nk=nk)

    out = pl.pallas_call(
        kernel,
        out_shape=jax.ShapeDtypeStruct((B, M, C), jnp.float32),
        grid_spec=pltpu.PrefetchScalarGridSpec(
            num_scalar_prefetch=0,
            grid=(B, nk),
            in_specs=[
                pl.BlockSpec((1, M, tk), lambda b, k: (b, 0, k)),
                pl.BlockSpec((1, tk, C), lambda b, k: (b, k, 0)),
            ],
            out_specs=pl.BlockSpec((1, M, C), lambda b, k: (b, 0, 0)),
            scratch_shapes=[pltpu.VMEM((M, C), jnp.float32)],
        ),
        compiler_params=pltpu.CompilerParams(
            dimension_semantics=("parallel", "arbitrary"),
            vmem_limit_bytes=32 * 1024 * 1024,
        ),
        cost_estimate=pl.CostEstimate(
            flops=2 * B * M * C * HW,
            transcendentals=B * (M * C + 1),
            bytes_accessed=4 * (B * M * hwp + B * hwp * C + B * M * C),
        ),
    )(f2m, f1t)

    # Row-major (M, C) flatten matches torch's .view(B, -1); free reshape in XLA.
    return out.reshape(B, M * C)


# ------------------------------ JAX reference ------------------------------

def ref_bpp(features1, features2, epsilon):
    B, C, H, W = features1.shape
    _, M, AH, AW = features2.shape
    if (AH, AW) != (H, W):
        features2 = _bilinear_resize_ac(features2, H, W)
    g = jnp.einsum("imjk,injk->imn", features2, features1,
                   precision=lax.Precision.HIGHEST) / float(H * W)
    g = g.reshape(B, -1)
    g = jnp.sign(g) * jnp.sqrt(jnp.abs(g) + epsilon)
    norm = jnp.sqrt(jnp.sum(g * g, axis=-1, keepdims=True))
    return g / jnp.maximum(norm, 1e-12)


# ----------------------------------- main -----------------------------------

if __name__ == "__main__":
    key = jax.random.PRNGKey(0)
    k1, k2, k3 = jax.random.split(key, 3)

    B, C, M = 2, 32, 64
    H = W = 24          # HW = 576 -> tk = 256, 3 K-tiles (exercises accumulation + padding)
    eps = 1e-4

    features1 = jax.random.normal(k1, (B, C, H, W), jnp.float32)
    features2_same = jax.random.normal(k2, (B, M, H, W), jnp.float32)
    features2_small = jax.random.normal(k3, (B, M, H // 2, W // 2), jnp.float32)

    for f2 in (features2_same, features2_small):
        out = jax.block_until_ready(bpp_forward(features1, f2, eps))
        ref = jax.block_until_ready(ref_bpp(features1, f2, eps))
        assert out.shape == ref.shape == (B, M * C), (out.shape, ref.shape)
        max_err = float(jnp.max(jnp.abs(out - ref)))
        assert bool(jnp.allclose(out, ref, rtol=1e-3, atol=1e-4)), max_err

    print("KERNEL_OK")
</pallas_src>

<mosaic_0001>
module attributes {stable_mosaic.version = 11 : i64} {
  func.func @_bpp_kernel(%arg0: i32, %arg1: i32, %arg2: memref<1x64x256xf32, #tpu.memory_space<vmem>>, %arg3: memref<1x256x32xf32, #tpu.memory_space<vmem>>, %arg4: memref<1x64x32xf32, #tpu.memory_space<vmem>>, %arg5: memref<64x32xf32, #tpu.memory_space<vmem>>) attributes {dimension_semantics = [#tpu.dimension_semantics<parallel>, #tpu.dimension_semantics<arbitrary>], iteration_bounds = array<i64: 2, 3>, scalar_prefetch = 0 : i64, scratch_operands = 1 : i64, tpu.core_type = #tpu.core_type<tc>, window_params = [{transform_indices = @transform_0, window_bounds = array<i64: 1, 64, 256>}, {transform_indices = @transform_1, window_bounds = array<i64: 1, 256, 32>}, {transform_indices = @transform_2, window_bounds = array<i64: 1, 64, 32>}]} {
    %c0_i32 = arith.constant 0 : i32
    %0 = arith.cmpi eq, %arg1, %c0_i32 : i32
    %1 = arith.extui %0 : i1 to i32
    %c0_i32_0 = arith.constant 0 : i32
    %2 = arith.cmpi ne, %1, %c0_i32_0 : i32
    scf.if %2 {
      %cst_11 = arith.constant 0.000000e+00 : f32
      %14 = vector.broadcast %cst_11 : f32 to vector<64x32xf32>
      %c0_12 = arith.constant 0 : index
      %c0_13 = arith.constant 0 : index
      %15 = vector.load %arg5[%c0_12, %c0_13] : memref<64x32xf32, #tpu.memory_space<vmem>>, vector<64x32xf32>
      tpu.vector_store %arg5[%c0_12, %c0_13], %14 {strides = array<i32>} : memref<64x32xf32, #tpu.memory_space<vmem>>, vector<64x32xf32>,
    } else {
    }
    %c0 = arith.constant 0 : index
    %c0_1 = arith.constant 0 : index
    %3 = vector.load %arg5[%c0, %c0_1] : memref<64x32xf32, #tpu.memory_space<vmem>>, vector<64x32xf32>
    %c0_2 = arith.constant 0 : index
    %c0_3 = arith.constant 0 : index
    %c0_4 = arith.constant 0 : index
    %4 = vector.load %arg2[%c0_2, %c0_3, %c0_4] : memref<1x64x256xf32, #tpu.memory_space<vmem>>, vector<1x64x256xf32>
    %5 = vector.shape_cast %4 : vector<1x64x256xf32> to vector<64x256xf32>
    %c0_5 = arith.constant 0 : index
    %c0_6 = arith.constant 0 : index
    %c0_7 = arith.constant 0 : index
    %6 = vector.load %arg3[%c0_5, %c0_6, %c0_7] : memref<1x256x32xf32, #tpu.memory_space<vmem>>, vector<1x256x32xf32>
    %7 = vector.shape_cast %6 : vector<1x256x32xf32> to vector<256x32xf32>
    %cst = arith.constant dense<0.000000e+00> : vector<64x32xf32>
    %8 = tpu.matmul %5, %7, %cst {dimension_numbers = #tpu.dot_dimension_numbers<[1], [0], [0], [1], [0, 0, 1, 1], [], []>} : vector<64x256xf32>, vector<256x32xf32>, vector<64x32xf32> -> vector<64x32xf32>
    %9 = arith.addf %3, %8 : vector<64x32xf32>
    %c0_8 = arith.constant 0 : index
    %c0_9 = arith.constant 0 : index
    %10 = vector.load %arg5[%c0_8, %c0_9] : memref<64x32xf32, #tpu.memory_space<vmem>>, vector<64x32xf32>
    tpu.vector_store %arg5[%c0_8, %c0_9], %9 {strides = array<i32>} : memref<64x32xf32, #tpu.memory_space<vmem>>, vector<64x32xf32>,
    %c2_i32 = arith.constant 2 : i32
    %11 = arith.cmpi eq, %arg1, %c2_i32 : i32
    %12 = arith.extui %11 : i1 to i32
    %c0_i32_10 = arith.constant 0 : i32
    %13 = arith.cmpi ne, %12, %c0_i32_10 : i32
    scf.if %13 {
      %c0_11 = arith.constant 0 : index
      %c0_12 = arith.constant 0 : index
      %14 = vector.load %arg5[%c0_11, %c0_12] : memref<64x32xf32, #tpu.memory_space<vmem>>, vector<64x32xf32>
      %cst_13 = arith.constant 0.00173611112 : f32
      %15 = vector.broadcast %cst_13 : f32 to vector<64x32xf32>
      %16 = arith.mulf %14, %15 : vector<64x32xf32>
      %cst_14 = arith.constant 0.000000e+00 : f32
      %17 = vector.broadcast %cst_14 : f32 to vector<64x32xf32>
      %18 = arith.cmpf ogt, %16, %17 : vector<64x32xf32>
      %cst_15 = arith.constant 0.000000e+00 : f32
      %19 = vector.broadcast %cst_15 : f32 to vector<64x32xf32>
      %20 = arith.cmpf olt, %16, %19 : vector<64x32xf32>
      %cst_16 = arith.constant -1.000000e+00 : f32
      %cst_17 = arith.constant 0.000000e+00 : f32
      %21 = vector.broadcast %cst_16 : f32 to vector<64x32xf32>
      %22 = vector.broadcast %cst_17 : f32 to vector<64x32xf32>
      %23 = arith.select %20, %21, %22 : vector<64x32xi1>, vector<64x32xf32>
      %cst_18 = arith.constant 1.000000e+00 : f32
      %24 = vector.broadcast %cst_18 : f32 to vector<64x32xf32>
      %25 = arith.select %18, %24, %23 : vector<64x32xi1>, vector<64x32xf32>
      %26 = math.absf %16 : vector<64x32xf32>
      %cst_19 = arith.constant 9.99999974E-5 : f32
      %27 = vector.broadcast %cst_19 : f32 to vector<64x32xf32>
      %28 = arith.addf %26, %27 : vector<64x32xf32>
      %29 = math.sqrt %28 : vector<64x32xf32>
      %30 = arith.mulf %25, %29 : vector<64x32xf32>
      %31 = arith.mulf %30, %30 : vector<64x32xf32>
      %cst_20 = arith.constant dense<0.000000e+00> : vector<64xf32>
      %32 = vector.multi_reduction <add>, %31, %cst_20 [1] : vector<64x32xf32> to vector<64xf32>
      %33 = vector.shape_cast %32 : vector<64xf32> to vector<64x1xf32>
      %cst_21 = arith.constant dense<0.000000e+00> : vector<1xf32>
      %34 = vector.multi_reduction <add>, %33, %cst_21 [0] : vector<64x1xf32> to vector<1xf32>
      %35 = vector.shape_cast %34 : vector<1xf32> to vector<1x1xf32>
      %36 = math.sqrt %35 : vector<1x1xf32>
      %cst_22 = arith.constant 9.99999996E-13 : f32
      %37 = vector.broadcast %cst_22 : f32 to vector<1x1xf32>
      %38 = arith.maximumf %36, %37 : vector<1x1xf32>
      %cst_23 = arith.constant 1.000000e+00 : f32
      %39 = vector.broadcast %cst_23 : f32 to vector<1x1xf32>
      %40 = arith.divf %39, %38 : vector<1x1xf32>
      %41 = vector.broadcast %40 : vector<1x1xf32> to vector<64x32xf32>
      %42 = arith.mulf %30, %41 : vector<64x32xf32>
      %c0_24 = arith.constant 0 : index
      %c0_25 = arith.constant 0 : index
      %c0_26 = arith.constant 0 : index
      %43 = vector.load %arg4[%c0_24, %c0_25, %c0_26] : memref<1x64x32xf32, #tpu.memory_space<vmem>>, vector<1x64x32xf32>
      %44 = vector.shape_cast %43 : vector<1x64x32xf32> to vector<64x32xf32>
      %45 = vector.shape_cast %42 : vector<64x32xf32> to vector<1x64x32xf32>
      tpu.vector_store %arg4[%c0_24, %c0_25, %c0_26], %45 {strides = array<i32>} : memref<1x64x32xf32, #tpu.memory_space<vmem>>, vector<1x64x32xf32>,
    } else {
    }
    return
  }
  func.func @transform_0(%arg0: i32, %arg1: i32) -> (i32, i32, i32) {
    %c0_i32 = arith.constant 0 : i32
    %c0_i32_0 = arith.constant 0 : i32
    return %arg0, %c0_i32, %arg1 : i32, i32, i32
  }
  func.func @transform_1(%arg0: i32, %arg1: i32) -> (i32, i32, i32) {
    %c0_i32 = arith.constant 0 : i32
    %c0_i32_0 = arith.constant 0 : i32
    return %arg0, %arg1, %c0_i32 : i32, i32, i32
  }
  func.func @transform_2(%arg0: i32, %arg1: i32) -> (i32, i32, i32) {
    %c0_i32 = arith.constant 0 : i32
    %c0_i32_0 = arith.constant 0 : i32
    %c0_i32_1 = arith.constant 0 : i32
    return %arg0, %c0_i32, %c0_i32_0 : i32, i32, i32
  }
}

</mosaic_0001>

<llo_original>
// kernel: tpu_custom_call.1
$region0: #{tpu_custom_call.1}
  #allocation0 [shape = 'u32[]', space=smem, size = 0x4, offset = 0x4, fixed_abs, tag = 'smem constant byte address 0x4 - core index']
  #allocation1 [shape = 'u32[144,128]{1,0:T(1,128)}', space=vmem, size = 0x12000, scoped, tag = 'internal scratch']
  #allocation2 [shape = 'f32[64,32]{1,0:T(8,128)}', space=vmem, size = 0x8000, scoped, tag = 'scratch operand']
  %s0 = inlined_call_operand.vmem [shape: f32[2,64,768], index: 0, kind: input, shape index: {}]
  %s1 = inlined_call_operand.vmem [shape: f32[2,768,32], index: 1, kind: input, shape index: {}]
  %s2 = inlined_call_operand.vmem [shape: f32[2,64,32], index: 2, kind: output, shape index: {}]
  %s3 = sld [smem:[#allocation0]]
  $region72: #{tpu_custom_call.1} parent=0
    _
  %s5 = ssub.s32 1, %s3
  %s6 = scalar_select 0, %s5, %s3
  $region1: #{tpu_custom_call.1} parent=0
    #allocation3 [shape = 'u8[131072]{0}', space=vmem, size = 0x20000, scoped, tag = 'input window, operand 0']
    loop: start=0, step=1, limit=8
    $region2: #{tpu_custom_call.1} parent=1 // loop_pre_header
      _
    $region3: #{tpu_custom_call.1} parent=1 // loop_header
      %s8 = sphi 0, %s12
      %p9 = scmp.ge.s32.totalorder %s8, 8
      %s15 = sphi 0, %s27
      %s16 = sphi 0, %s23
      %s17 = sphi 0, %s15
      %s18 = sphi 0, %s16
      %s19 = sphi 0, %s17
      %s20 = sphi 0, %s18
      %s32 = sphi 0, %s34
      %s35 = sphi 0, %s32
      %s36 = sphi 0, %s35
      %s52 = sphi 0, %s36
      %s60 = sphi 0, %s62
      %s63 = sphi 0, %s60
      %s64 = sphi 0, %s63
      %s80 = sphi 0, %s64
      %s86 = sphi 0, %s88
      %s89 = sphi 0, %s86
      %s90 = sphi 0, %s89
      %s106 = sphi 0, %s90
    $region4: #{tpu_custom_call.1} parent=1 // loop_header_branch
      %11 = sbr.rel (%p9) target = $region8
    $region5: #{tpu_custom_call.1} parent=1 // loop_body
      %s13 = ssub.s32 %s8, 1
      %s14 = ssub.s32 %s8, 2
      %s21 = sadd.s32 1, %s16
      %p22 = scmp.ge.s32.totalorder %s21, 3
      %s23 = scalar_select %p22, 0, %s21
      %s24 = sadd.s32 1, %s15
      %s25 = scalar_select %p22, %s24, %s15
      %p26 = scmp.ge.s32.totalorder %s25, 2
      %s27 = scalar_select %p26, 0, %s25
      %s28 = ssub.s32 %s15, %s27
      %s29 = ssub.s32 %s16, %s23
      %s30 = sor.u32 %s28, %s29
      %p31 = scmp.eq.s32.totalorder %s30, 0
      %s33 = sadd.s32 %s32, 1
      %s34 = scalar_select %p31, %s32, %s33
      %p37 = pneg %p31
      %p38 = scmp.eq.s32.totalorder %s8, 5
      %p39 = por %p37, %p38
      %p40 = scmp.ne.s32.totalorder %s32, %s35
      %p41 = scmp.eq.s32.totalorder %s8, 0
      %p42 = por %p40, %p41
      %p43 = scmp.ne.s32.totalorder %s32, %s35
      %p44 = scmp.eq.s32.totalorder %s13, 5
      %p45 = por %p43, %p44
      %p46 = scmp.ne.s32.totalorder %s35, %s36
      %p47 = scmp.eq.s32.totalorder %s13, 0
      %p48 = por %p46, %p47
      %p49 = scmp.ne.s32.totalorder %s35, %s36
      %p50 = scmp.eq.s32.totalorder %s14, 5
      %p51 = por %p49, %p50
      %p53 = scmp.ne.s32.totalorder %s36, %s52
      %p54 = scmp.eq.s32.totalorder %s14, 0
      %p55 = por %p53, %p54
      %s56 = ssub.s32 %s15, %s27
      %s57 = ssub.s32 %s16, %s23
      %s58 = sor.u32 %s56, %s57
      %p59 = scmp.eq.s32.totalorder %s58, 0
      %s61 = sadd.s32 %s60, 1
      %s62 = scalar_select %p59, %s60, %s61
      %p65 = pneg %p59
      %p66 = scmp.eq.s32.totalorder %s8, 5
      %p67 = por %p65, %p66
      %p68 = scmp.ne.s32.totalorder %s60, %s63
      %p69 = scmp.eq.s32.totalorder %s8, 0
      %p70 = por %p68, %p69
      %p71 = scmp.ne.s32.totalorder %s60, %s63
      %p72 = scmp.eq.s32.totalorder %s13, 5
      %p73 = por %p71, %p72
      %p74 = scmp.ne.s32.totalorder %s63, %s64
      %p75 = scmp.eq.s32.totalorder %s13, 0
      %p76 = por %p74, %p75
      %p77 = scmp.ne.s32.totalorder %s63, %s64
      %p78 = scmp.eq.s32.totalorder %s14, 5
      %p79 = por %p77, %p78
      %p81 = scmp.ne.s32.totalorder %s64, %s80
      %p82 = scmp.eq.s32.totalorder %s14, 0
      %p83 = por %p81, %p82
      %s84 = ssub.s32 %s15, %s27
      %p85 = scmp.eq.s32.totalorder %s84, 0
      %s87 = sadd.s32 %s86, 1
      %s88 = scalar_select %p85, %s86, %s87
      %p91 = pneg %p85
      %p92 = scmp.eq.s32.totalorder %s8, 5
      %p93 = por %p91, %p92
      %p94 = scmp.ne.s32.totalorder %s86, %s89
      %p95 = scmp.eq.s32.totalorder %s8, 0
      %p96 = por %p94, %p95
      %p97 = scmp.ne.s32.totalorder %s86, %s89
      %p98 = scmp.eq.s32.totalorder %s13, 5
      %p99 = por %p97, %p98
      %p100 = scmp.ne.s32.totalorder %s89, %s90
      %p101 = scmp.eq.s32.totalorder %s13, 0
      %p102 = por %p100, %p101
      %p103 = scmp.ne.s32.totalorder %s89, %s90
      %p104 = scmp.eq.s32.totalorder %s14, 5
      %p105 = por %p103, %p104
      %p107 = scmp.ne.s32.totalorder %s90, %s106
      %p108 = scmp.eq.s32.totalorder %s14, 0
      %p109 = por %p107, %p108
      %p110 = scmp.le.s32.totalorder 1, %s8
      %p111 = scmp.lt.s32.totalorder %s8, 7
      %p112 = pnand %p110, %p111
      %p113 = pneg %p112
      // Predicated region
      $region9: #{tpu_custom_call.1} parent=5 // pred_check
        _
      $region10: #{tpu_custom_call.1} parent=5 // pred_check_branch
        %115 = sbr.rel (%p112) target = $region12
      $region11: #{tpu_custom_call.1} parent=5 // pred_region
        %s116 = ssub.s32 %s8, 1
      $region12: #{tpu_custom_call.1} parent=5 // pred_fallthru
        _
      %p117 = scmp.lt.s32.totalorder %s8, 6
      // Predicated region
      $region13: #{tpu_custom_call.1} parent=5 // pred_check
        %p118 = pneg %p117
      $region14: #{tpu_custom_call.1} parent=5 // pred_check_branch
        %120 = sbr.rel (%p118) target = $region16
      $region15: #{tpu_custom_call.1} parent=5 // pred_region
        // Predicated region
        $region17: #{tpu_custom_call.1} parent=15 // pred_check
          %p121 = pneg %p42
        $region18: #{tpu_custom_call.1} parent=15 // pred_check_branch
          %123 = sbr.rel (%p121) target = $region20
        $region19: #{tpu_custom_call.1} parent=15 // pred_region
          %s124 = sand.u32 %s32, 1
          %s125 = sand.u32 %s32, 1
          %s126 = smul.addr %s125, 128
          %s127 = scalar_lea.vmem [#allocation3], %s126
          %s128 = smul.u32 2, %s16
          %s129 = smul.addr %s15, 48
          %s130 = sadd.s32 %s128, %s129
          %s131 = smul.addr %s130, 8
          %s132 = scalar_lea.vmem %s0, %s131
          // Predicated region
          $region21: #{tpu_custom_call.1} parent=19 // pred_check
            _
          $region22: #{tpu_custom_call.1} parent=19 // pred_check_branch
            %134 = sbr.rel (0) target = $region24
          $region23: #{tpu_custom_call.1} parent=19 // pred_region
            // Predicated region
            $region25: #{tpu_custom_call.1} parent=23 // pred_check
              _
            $region26: #{tpu_custom_call.1} parent=23 // pred_check_branch
              %136 = sbr.rel (0) target = $region28
            $region27: #{tpu_custom_call.1} parent=23 // pred_region
              loop: start=0, step=1, limit=1
              $region29: #{tpu_custom_call.1} parent=27 // loop_pre_header
                _
              $region30: #{tpu_custom_call.1} parent=27 // loop_header
                %s138 = sphi 0, %s142
                %p139 = scmp.ge.s32.totalorder %s138, 1
                %s143 = sphi %s132, %s132
                %s144 = sphi %s127, %s127
              $region31: #{tpu_custom_call.1} parent=27 // loop_header_branch
                %141 = sbr.rel (%p139) target = $region35
              $region32: #{tpu_custom_call.1} parent=27 // loop_body
                %v145 = vld [vmem:[%s143] sm:$0xff]
                %146 = vst [vmem:[%s144] sm:$0xff] %v145
                %v147 = vld [vmem:[%s143 + $0x8] sm:$0xff]
                %148 = vst [vmem:[%s144 + $0x8] sm:$0xff] %v147
                %v149 = vld [vmem:[%s143 + $0x30] sm:$0xff]
                %150 = vst [vmem:[%s144 + $0x10] sm:$0xff] %v149
                %v151 = vld [vmem:[%s143 + $0x38] sm:$0xff]
                %152 = vst [vmem:[%s144 + $0x18] sm:$0xff] %v151
                %v153 = vld [vmem:[%s143 + $0x60] sm:$0xff]
                %154 = vst [vmem:[%s144 + $0x20] sm:$0xff] %v153
                %v155 = vld [vmem:[%s143 + $0x68] sm:$0xff]
                %156 = vst [vmem:[%s144 + $0x28] sm:$0xff] %v155
                %v157 = vld [vmem:[%s143 + $0x90] sm:$0xff]
                %158 = vst [vmem:[%s144 + $0x30] sm:$0xff] %v157
                %v159 = vld [vmem:[%s143 + $0x98] sm:$0xff]
                %160 = vst [vmem:[%s144 + $0x38] sm:$0xff] %v159
                %v161 = vld [vmem:[%s143 + $0xc0] sm:$0xff]
                %162 = vst [vmem:[%s144 + $0x40] sm:$0xff] %v161
                %v163 = vld [vmem:[%s143 + $0xc8] sm:$0xff]
                %164 = vst [vmem:[%s144 + $0x48] sm:$0xff] %v163
                %v165 = vld [vmem:[%s143 + $0xf0] sm:$0xff]
                %166 = vst [vmem:[%s144 + $0x50] sm:$0xff] %v165
                %v167 = vld [vmem:[%s143 + $0xf8] sm:$0xff]
                %168 = vst [vmem:[%s144 + $0x58] sm:$0xff] %v167
                %v169 = vld [vmem:[%s143 + $0x120] sm:$0xff]
                %170 = vst [vmem:[%s144 + $0x60] sm:$0xff] %v169
                %v171 = vld [vmem:[%s143 + $0x128] sm:$0xff]
                %172 = vst [vmem:[%s144 + $0x68] sm:$0xff] %v171
                %v173 = vld [vmem:[%s143 + $0x150] sm:$0xff]
                %174 = vst [vmem:[%s144 + $0x70] sm:$0xff] %v173
                %v175 = vld [vmem:[%s143 + $0x158] sm:$0xff]
                %176 = vst [vmem:[%s144 + $0x78] sm:$0xff] %v175
              $region33: #{tpu_custom_call.1} parent=27 // loop_footer
                %s142 = sadd.s32 1, %s138
              $region34: #{tpu_custom_call.1} parent=27 // loop_footer_branch
                %137 = sbr.rel target = $region30
              $region35: #{tpu_custom_call.1} parent=27 // loop_exit
                _
            $region28: #{tpu_custom_call.1} parent=23 // pred_fallthru
              _
            // Predicated region
            $region36: #{tpu_custom_call.1} parent=23 // pred_check
              _
            $region37: #{tpu_custom_call.1} parent=23 // pred_check_branch
              %178 = sbr.rel target = $region39
            $region38: #{tpu_custom_call.1} parent=23 // pred_region
              _
            $region39: #{tpu_custom_call.1} parent=23 // pred_fallthru
              _
          $region24: #{tpu_custom_call.1} parent=19 // pred_fallthru
            _
          %179 = vnop
        $region20: #{tpu_custom_call.1} parent=15 // pred_fallthru
          _
        // Predicated region
        $region40: #{tpu_custom_call.1} parent=15 // pred_check
          %p180 = pneg %p70
        $region41: #{tpu_custom_call.1} parent=15 // pred_check_branch
          %182 = sbr.rel (%p180) target = $region43
        $region42: #{tpu_custom_call.1} parent=15 // pred_region
          %s183 = smul.u32 32, %s16
          %p184 = scmp.lt.s32.totalorder %s15, 1
          %s185 = scalar_select %p184, %s15, 1
          %p186 = scmp.lt.s32.totalorder %s183, 95
          %s187 = scalar_select %p186, %s183, 95
          %s188 = smul.addr %s185, 96
          %s189 = sadd.s32 %s187, %s188
          %s190 = smul.addr %s189, 8
          %s191 = scalar_lea.vmem %s1, %s190
          %s192 = smul.u32 32, %s16
        $region43: #{tpu_custom_call.1} parent=15 // pred_fallthru
          _
      $region16: #{tpu_custom_call.1} parent=5 // pred_fallthru
        _
      %p193 = scmp.le.s32.totalorder 1, %s8
      %p194 = scmp.lt.s32.totalorder %s8, 7
      %p195 = pnand %p193, %p194
      %p196 = pneg %p195
      // Predicated region
      $region44: #{tpu_custom_call.1} parent=5 // pred_check
        _
      $region45: #{tpu_custom_call.1} parent=5 // pred_check_branch
        %198 = sbr.rel (%p195) target = $region47
      $region46: #{tpu_custom_call.1} parent=5 // pred_region
        %s199 = ssub.s32 %s8, 1
        %s200 = sand.u32 %s35, 1
        %s201 = sand.u32 %s35, 1
        %s202 = smul.addr %s201, 128
        %s203 = scalar_lea.vmem [#allocation3], %s202
        // Predicated region
        $region48: #{tpu_custom_call.1} parent=46 // pred_check
          %p204 = pneg %p48
        $region49: #{tpu_custom_call.1} parent=46 // pred_check_branch
          %206 = sbr.rel (%p204) target = $region51
        $region50: #{tpu_custom_call.1} parent=46 // pred_region
          _
        $region51: #{tpu_custom_call.1} parent=46 // pred_fallthru
          _
        %s207 = sand.u32 %s35, 1
        %s208 = sand.u32 %s35, 1
        %s209 = smul.addr %s208, 128
        %s210 = scalar_lea.vmem [#allocation3], %s209
        %p211 = pneg %p48
        %p212 = pneg %p45
        %s213 = smul.u32 32, %s18
        %p214 = scmp.lt.s32.totalorder %s17, 1
        %s215 = scalar_select %p214, %s17, 1
        %p216 = scmp.lt.s32.totalorder %s213, 95
        %s217 = scalar_select %p216, %s213, 95
        %s218 = smul.addr %s215, 96
        %s219 = sadd.s32 %s217, %s218
        %s220 = smul.addr %s219, 8
        %s221 = scalar_lea.vmem %s1, %s220
        %p222 = pneg %p76
        %p223 = pneg %p73
        %p224 = pneg %p102
        %p225 = pneg %p99
        %p226 = scmp.lt.s32.totalorder %s17, 1
        %s227 = scalar_select %p226, %s17, 1
        %s228 = smul.addr %s227, 8
        %s229 = smul.addr %s228, 8
        %s230 = scalar_lea.vmem %s2, %s229
        %s231 = smul.u32 2, %s18
        %s232 = smul.u32 32, %s18
        %p233 = scmp.lt.s32.totalorder %s17, 1
        %s234 = scalar_select %p233, %s17, 1
        %p235 = scmp.lt.s32.totalorder %s232, 95
        %s236 = scalar_select %p235, %s232, 95
        %s237 = smul.addr %s234, 96
        %s238 = sadd.s32 %s236, %s237
        %s239 = smul.addr %s238, 8
        %s240 = scalar_lea.vmem %s1, %s239
        %s241 = smul.u32 32, %s18
        %p242 = scmp.lt.s32.totalorder %s17, 1
        %s243 = scalar_select %p242, %s17, 1
        %s244 = smul.addr %s243, 8
        %s245 = smul.addr %s244, 8
        %s246 = scalar_lea.vmem %s2, %s245
        %p247 = scmp.eq.s32.totalorder %s18, 0
        // Predicated region
        $region52: #{tpu_custom_call.1} parent=46 // pred_check
          %p248 = pneg %p247
        $region53: #{tpu_custom_call.1} parent=46 // pred_check_branch
          %250 = sbr.rel (%p248) target = $region55
        $region54: #{tpu_custom_call.1} parent=46 // pred_region
          %vm251 = vcmask 261120
          %252 = vst.msk [vmem:[#allocation2] sm:$0xff] %vm251, 0.0
          %253 = vst.msk [vmem:[#allocation2 + $0x8] sm:$0xff] %vm251, 0.0
          %254 = vst.msk [vmem:[#allocation2 + $0x10] sm:$0xff] %vm251, 0.0
          %255 = vst.msk [vmem:[#allocation2 + $0x18] sm:$0xff] %vm251, 0.0
          %256 = vst.msk [vmem:[#allocation2 + $0x20] sm:$0xff] %vm251, 0.0
          %257 = vst.msk [vmem:[#allocation2 + $0x28] sm:$0xff] %vm251, 0.0
          %258 = vst.msk [vmem:[#allocation2 + $0x30] sm:$0xff] %vm251, 0.0
          %259 = vst.msk [vmem:[#allocation2 + $0x38] sm:$0xff] %vm251, 0.0
        $region55: #{tpu_custom_call.1} parent=46 // pred_fallthru
          _
        %v260 = vld [vmem:[#allocation2] sm:$0xff]
        %v261 = vld [vmem:[#allocation2 + $0x8] sm:$0xff]
        %v262 = vld [vmem:[#allocation2 + $0x10] sm:$0xff]
        %v263 = vld [vmem:[#allocation2 + $0x18] sm:$0xff]
        %v264 = vld [vmem:[#allocation2 + $0x20] sm:$0xff]
        %v265 = vld [vmem:[#allocation2 + $0x28] sm:$0xff]
        %v266 = vld [vmem:[#allocation2 + $0x30] sm:$0xff]
        %v267 = vld [vmem:[#allocation2 + $0x38] sm:$0xff]
        %v268 = vld [vmem:[%s203] sm:$0xff]
        %v269 = vld [vmem:[%s203 + $0x8] sm:$0xff]
        %v270 = vld [vmem:[%s203 + $0x10] sm:$0xff]
        %v271 = vld [vmem:[%s203 + $0x18] sm:$0xff]
        %v272 = vld [vmem:[%s203 + $0x20] sm:$0xff]
        %v273 = vld [vmem:[%s203 + $0x28] sm:$0xff]
        %v274 = vld [vmem:[%s203 + $0x30] sm:$0xff]
        %v275 = vld [vmem:[%s203 + $0x38] sm:$0xff]
        %v276 = vld [vmem:[%s203 + $0x40] sm:$0xff]
        %v277 = vld [vmem:[%s203 + $0x48] sm:$0xff]
        %v278 = vld [vmem:[%s203 + $0x50] sm:$0xff]
        %v279 = vld [vmem:[%s203 + $0x58] sm:$0xff]
        %v280 = vld [vmem:[%s203 + $0x60] sm:$0xff]
        %v281 = vld [vmem:[%s203 + $0x68] sm:$0xff]
        %v282 = vld [vmem:[%s203 + $0x70] sm:$0xff]
        %v283 = vld [vmem:[%s203 + $0x78] sm:$0xff]
        %v284 = vld [vmem:[%s240] sm:$0xff]
        %v285 = vld [vmem:[%s240 + $0x8] sm:$0xff]
        %v286 = vld [vmem:[%s240 + $0x10] sm:$0xff]
        %v287 = vld [vmem:[%s240 + $0x18] sm:$0xff]
        %v288 = vld [vmem:[%s240 + $0x20] sm:$0xff]
        %v289 = vld [vmem:[%s240 + $0x28] sm:$0xff]
        %v290 = vld [vmem:[%s240 + $0x30] sm:$0xff]
        %v291 = vld [vmem:[%s240 + $0x38] sm:$0xff]
        %v292 = vld [vmem:[%s240 + $0x40] sm:$0xff]
        %v293 = vld [vmem:[%s240 + $0x48] sm:$0xff]
        %v294 = vld [vmem:[%s240 + $0x50] sm:$0xff]
        %v295 = vld [vmem:[%s240 + $0x58] sm:$0xff]
        %v296 = vld [vmem:[%s240 + $0x60] sm:$0xff]
        %v297 = vld [vmem:[%s240 + $0x68] sm:$0xff]
        %v298 = vld [vmem:[%s240 + $0x70] sm:$0xff]
        %v299 = vld [vmem:[%s240 + $0x78] sm:$0xff]
        %v300 = vld [vmem:[%s240 + $0x80] sm:$0xff]
        %v301 = vld [vmem:[%s240 + $0x88] sm:$0xff]
        %v302 = vld [vmem:[%s240 + $0x90] sm:$0xff]
        %v303 = vld [vmem:[%s240 + $0x98] sm:$0xff]
        %v304 = vld [vmem:[%s240 + $0xa0] sm:$0xff]
        %v305 = vld [vmem:[%s240 + $0xa8] sm:$0xff]
        %v306 = vld [vmem:[%s240 + $0xb0] sm:$0xff]
        %v307 = vld [vmem:[%s240 + $0xb8] sm:$0xff]
        %v308 = vld [vmem:[%s240 + $0xc0] sm:$0xff]
        %v309 = vld [vmem:[%s240 + $0xc8] sm:$0xff]
        %v310 = vld [vmem:[%s240 + $0xd0] sm:$0xff]
        %v311 = vld [vmem:[%s240 + $0xd8] sm:$0xff]
        %v312 = vld [vmem:[%s240 + $0xe0] sm:$0xff]
        %v313 = vld [vmem:[%s240 + $0xe8] sm:$0xff]
        %v314 = vld [vmem:[%s240 + $0xf0] sm:$0xff]
        %v315 = vld [vmem:[%s240 + $0xf8] sm:$0xff]
        %316 = vmatprep.subr.mxu0 0.0
        %317 = vmatpush1.msra.mxu0 %v284
        %318 = vmatprep.subr.mxu0 0.0
        %319 = vmatpush1.msra.mxu0 %v285
        %320 = vmatprep.subr.mxu0 0.0
        %321 = vmatpush1.msra.mxu0 %v286
        %322 = vmatprep.subr.mxu0 0.0
        %323 = vmatpush1.msra.mxu0 %v287
        %324 = vmatprep.subr.mxu0 0.0
        %325 = vmatpush1.msra.mxu0 %v288
        %326 = vmatprep.subr.mxu0 0.0
        %327 = vmatpush1.msra.mxu0 %v289
        %328 = vmatprep.subr.mxu0 0.0
        %329 = vmatpush1.msra.mxu0 %v290
        %330 = vmatprep.subr.mxu0 0.0
        %331 = vmatpush1.msra.mxu0 %v291
        %332 = vmatprep.subr.mxu0 0.0
        %333 = vmatpush1.msra.mxu0 %v292
        %334 = vmatprep.subr.mxu0 0.0
        %335 = vmatpush1.msra.mxu0 %v293
        %336 = vmatprep.subr.mxu0 0.0
        %337 = vmatpush1.msra.mxu0 %v294
        %338 = vmatprep.subr.mxu0 0.0
        %339 = vmatpush1.msra.mxu0 %v295
        %340 = vmatprep.subr.mxu0 0.0
        %341 = vmatpush1.msra.mxu0 %v296
        %342 = vmatprep.subr.mxu0 0.0
        %343 = vmatpush1.msra.mxu0 %v297
        %344 = vmatprep.subr.mxu0 0.0
        %345 = vmatpush1.msra.mxu0 %v298
        %346 = vmatprep.subr.mxu0 0.0
        %347 = vmatpush1.msra.mxu0 %v299
        %348 = vmatprep.subr.mxu0 0.0
        %349 = vmatpush1.msra.mxu0 %v300
        %350 = vmatprep.subr.mxu0 0.0
        %351 = vmatpush1.msra.mxu0 %v301
        %352 = vmatprep.subr.mxu0 0.0
        %353 = vmatpush1.msra.mxu0 %v302
        %354 = vmatprep.subr.mxu0 0.0
        %355 = vmatpush1.msra.mxu0 %v303
        %356 = vmatprep.subr.mxu0 0.0
        %357 = vmatpush1.msra.mxu0 %v304
        %358 = vmatprep.subr.mxu0 0.0
        %359 = vmatpush1.msra.mxu0 %v305
        %360 = vmatprep.subr.mxu0 0.0
        %361 = vmatpush1.msra.mxu0 %v306
        %362 = vmatprep.subr.mxu0 0.0
        %363 = vmatpush1.msra.mxu0 %v307
        %364 = vmatprep.subr.mxu0 0.0
        %365 = vmatpush1.msra.mxu0 %v308
        %366 = vmatprep.subr.mxu0 0.0
        %367 = vmatpush1.msra.mxu0 %v309
        %368 = vmatprep.subr.mxu0 0.0
        %369 = vmatpush1.msra.mxu0 %v310
        %370 = vmatprep.subr.mxu0 0.0
        %371 = vmatpush1.msra.mxu0 %v311
        %372 = vmatprep.subr.mxu0 0.0
        %373 = vmatpush1.msra.mxu0 %v312
        %374 = vmatprep.subr.mxu0 0.0
        %375 = vmatpush1.msra.mxu0 %v313
        %376 = vmatprep.subr.mxu0 0.0
        %377 = vmatpush1.msra.mxu0 %v314
        %378 = vmatprep.subr.mxu0 0.0
        %379 = vmatpush1.msra.mxu0 %v315
        %380 = vmatprep.mubr.f32.mxu0 %v269
        %381 = vmatmul.mubr.f32.gmra.mrb[0].mxu0 %v268
        %v382 = vpop.f32.mrb[0].mxu0
        %v383 = vadd.f32 0.0, %v382
        %v384 = vpop.f32.mrb[0].mxu0
        %385 = vmatprep.mubr.f32.mxu0 %v271
        %386 = vmatmul.mubr.f32.gmra.mrb[0].mxu0 %v270
        %v387 = vpop.f32.mrb[0].mxu0
        %v388 = vadd.f32 0.0, %v387
        %v389 = vpop.f32.mrb[0].mxu0
        %390 = vmatprep.mubr.f32.mxu0 %v273
        %391 = vmatmul.mubr.f32.gmra.mrb[0].mxu0 %v272
        %v392 = vpop.f32.mrb[0].mxu0
        %v393 = vadd.f32 0.0, %v392
        %v394 = vpop.f32.mrb[0].mxu0
        %395 = vmatprep.mubr.f32.mxu0 %v275
        %396 = vmatmul.mubr.f32.gmra.mrb[0].mxu0 %v274
        %v397 = vpop.f32.mrb[0].mxu0
        %v398 = vadd.f32 0.0, %v397
        %v399 = vpop.f32.mrb[0].mxu0
        %400 = vmatprep.mubr.f32.mxu0 %v277
        %401 = vmatmul.mubr.f32.gmra.mrb[0].mxu0 %v276
        %v402 = vpop.f32.mrb[0].mxu0
        %v403 = vadd.f32 0.0, %v402
        %v404 = vpop.f32.mrb[0].mxu0
        %405 = vmatprep.mubr.f32.mxu0 %v279
        %406 = vmatmul.mubr.f32.gmra.mrb[0].mxu0 %v278
        %v407 = vpop.f32.mrb[0].mxu0
        %v408 = vadd.f32 0.0, %v407
        %v409 = vpop.f32.mrb[0].mxu0
        %410 = vmatprep.mubr.f32.mxu0 %v281
        %411 = vmatmul.mubr.f32.gmra.mrb[0].mxu0 %v280
        %v412 = vpop.f32.mrb[0].mxu0
        %v413 = vadd.f32 0.0, %v412
        %v414 = vpop.f32.mrb[0].mxu0
        %415 = vmatprep.mubr.f32.mxu0 %v283
        %416 = vmatmul.mubr.f32.gmra.mrb[0].mxu0 %v282
        %v417 = vpop.f32.mrb[0].mxu0
        %v418 = vadd.f32 0.0, %v417
        %v419 = vpop.f32.mrb[0].mxu0
        %420 = vdwg.mxu0
        %v421 = vadd.f32 %v260, %v383
        %v422 = vadd.f32 %v261, %v388
        %v423 = vadd.f32 %v262, %v393
        %v424 = vadd.f32 %v263, %v398
        %v425 = vadd.f32 %v264, %v403
        %v426 = vadd.f32 %v265, %v408
        %v427 = vadd.f32 %v266, %v413
        %v428 = vadd.f32 %v267, %v418
        %vm429 = vcmask 261120
        %430 = vst.msk [vmem:[#allocation2] sm:$0xff] %vm429, %v421
        %431 = vst.msk [vmem:[#allocation2 + $0x8] sm:$0xff] %vm429, %v422
        %432 = vst.msk [vmem:[#allocation2 + $0x10] sm:$0xff] %vm429, %v423
        %433 = vst.msk [vmem:[#allocation2 + $0x18] sm:$0xff] %vm429, %v424
        %434 = vst.msk [vmem:[#allocation2 + $0x20] sm:$0xff] %vm429, %v425
        %435 = vst.msk [vmem:[#allocation2 + $0x28] sm:$0xff] %vm429, %v426
        %436 = vst.msk [vmem:[#allocation2 + $0x30] sm:$0xff] %vm429, %v427
        %437 = vst.msk [vmem:[#allocation2 + $0x38] sm:$0xff] %vm429, %v428
        %p438 = scmp.eq.s32.totalorder %s18, 2
        // Predicated region
        $region56: #{tpu_custom_call.1} parent=46 // pred_check
          %p439 = pneg %p438
        $region57: #{tpu_custom_call.1} parent=46 // pred_check_branch
          %441 = sbr.rel (%p439) target = $region59
        $region58: #{tpu_custom_call.1} parent=46 // pred_region
          %v442 = vld [vmem:[#allocation2] sm:$0xff]
          %v443 = vld [vmem:[#allocation2 + $0x8] sm:$0xff]
          %v444 = vld [vmem:[#allocation2 + $0x10] sm:$0xff]
          %v445 = vld [vmem:[#allocation2 + $0x18] sm:$0xff]
          %v446 = vld [vmem:[#allocation2 + $0x20] sm:$0xff]
          %v447 = vld [vmem:[#allocation2 + $0x28] sm:$0xff]
          %v448 = vld [vmem:[#allocation2 + $0x30] sm:$0xff]
          %v449 = vld [vmem:[#allocation2 + $0x38] sm:$0xff]
          %v450 = vmul.f32 %v442, 0.0017361111
          %v451 = vmul.f32 %v443, 0.0017361111
          %v452 = vmul.f32 %v444, 0.0017361111
          %v453 = vmul.f32 %v445, 0.0017361111
          %v454 = vmul.f32 %v446, 0.0017361111
          %v455 = vmul.f32 %v447, 0.0017361111
          %v456 = vmul.f32 %v448, 0.0017361111
          %v457 = vmul.f32 %v449, 0.0017361111
          %vm458 = vcmp.gt.f32.partialorder %v450, 0.0
          %vm459 = vcmp.gt.f32.partialorder %v451, 0.0
          %vm460 = vcmp.gt.f32.partialorder %v452, 0.0
          %vm461 = vcmp.gt.f32.partialorder %v453, 0.0
          %vm462 = vcmp.gt.f32.partialorder %v454, 0.0
          %vm463 = vcmp.gt.f32.partialorder %v455, 0.0
          %vm464 = vcmp.gt.f32.partialorder %v456, 0.0
          %vm465 = vcmp.gt.f32.partialorder %v457, 0.0
          %vm466 = vcmp.lt.f32.partialorder %v450, 0.0
          %vm467 = vcmp.lt.f32.partialorder %v451, 0.0
          %vm468 = vcmp.lt.f32.partialorder %v452, 0.0
          %vm469 = vcmp.lt.f32.partialorder %v453, 0.0
          %vm470 = vcmp.lt.f32.partialorder %v454, 0.0
          %vm471 = vcmp.lt.f32.partialorder %v455, 0.0
          %vm472 = vcmp.lt.f32.partialorder %v456, 0.0
          %vm473 = vcmp.lt.f32.partialorder %v457, 0.0
          %v474 = vsel %vm466, -1.0, 0.0
          %v475 = vsel %vm467, -1.0, 0.0
          %v476 = vsel %vm468, -1.0, 0.0
          %v477 = vsel %vm469, -1.0, 0.0
          %v478 = vsel %vm470, -1.0, 0.0
          %v479 = vsel %vm471, -1.0, 0.0
          %v480 = vsel %vm472, -1.0, 0.0
          %v481 = vsel %vm473, -1.0, 0.0
          %v482 = vsel %vm458, 1.0, %v474
          %v483 = vsel %vm459, 1.0, %v475
          %v484 = vsel %vm460, 1.0, %v476
          %v485 = vsel %vm461, 1.0, %v477
          %v486 = vsel %vm462, 1.0, %v478
          %v487 = vsel %vm463, 1.0, %v479
          %v488 = vsel %vm464, 1.0, %v480
          %v489 = vsel %vm465, 1.0, %v481
          %v490 = vand.u32 2147483647, %v450
          %v491 = vand.u32 2147483647, %v451
          %v492 = vand.u32 2147483647, %v452
          %v493 = vand.u32 2147483647, %v453
          %v494 = vand.u32 2147483647, %v454
          %v495 = vand.u32 2147483647, %v455
          %v496 = vand.u32 2147483647, %v456
          %v497 = vand.u32 2147483647, %v457
          %v498 = vadd.f32 %v490, 0.0001
          %v499 = vadd.f32 %v491, 0.0001
          %v500 = vadd.f32 %v492, 0.0001
          %v501 = vadd.f32 %v493, 0.0001
          %v502 = vadd.f32 %v494, 0.0001
          %v503 = vadd.f32 %v495, 0.0001
          %v504 = vadd.f32 %v496, 0.0001
          %v505 = vadd.f32 %v497, 0.0001
          %v506 = vrsqrt.pop %v498
          %v507 = vmul.f32 %v498, %v506
          %vm508 = vcmp.eq.f32.partialorder %v498, inf
          %v509 = vsel %vm508, %v498, %v507
          %vm510 = vcmp.eq.f32.partialorder %v498, 0.0
          %v511 = vand.u32 %v498, 2147483648
          %v512 = vsel %vm510, %v511, %v509
          %v513 = vrsqrt.pop %v499
          %v514 = vmul.f32 %v499, %v513
          %vm515 = vcmp.eq.f32.partialorder %v499, inf
          %v516 = vsel %vm515, %v499, %v514
          %vm517 = vcmp.eq.f32.partialorder %v499, 0.0
          %v518 = vand.u32 %v499, 2147483648
          %v519 = vsel %vm517, %v518, %v516
          %v520 = vrsqrt.pop %v500
          %v521 = vmul.f32 %v500, %v520
          %vm522 = vcmp.eq.f32.partialorder %v500, inf
          %v523 = vsel %vm522, %v500, %v521
          %vm524 = vcmp.eq.f32.partialorder %v500, 0.0
          %v525 = vand.u32 %v500, 2147483648
          %v526 = vsel %vm524, %v525, %v523
          %v527 = vrsqrt.pop %v501
          %v528 = vmul.f32 %v501, %v527
          %vm529 = vcmp.eq.f32.partialorder %v501, inf
          %v530 = vsel %vm529, %v501, %v528
          %vm531 = vcmp.eq.f32.partialorder %v501, 0.0
          %v532 = vand.u32 %v501, 2147483648
          %v533 = vsel %vm531, %v532, %v530
          %v534 = vrsqrt.pop %v502
          %v535 = vmul.f32 %v502, %v534
          %vm536 = vcmp.eq.f32.partialorder %v502, inf
          %v537 = vsel %vm536, %v502, %v535
          %vm538 = vcmp.eq.f32.partialorder %v502, 0.0
          %v539 = vand.u32 %v502, 2147483648
          %v540 = vsel %vm538, %v539, %v537
          %v541 = vrsqrt.pop %v503
          %v542 = vmul.f32 %v503, %v541
          %vm543 = vcmp.eq.f32.partialorder %v503, inf
          %v544 = vsel %vm543, %v503, %v542
          %vm545 = vcmp.eq.f32.partialorder %v503, 0.0
          %v546 = vand.u32 %v503, 2147483648
          %v547 = vsel %vm545, %v546, %v544
          %v548 = vrsqrt.pop %v504
          %v549 = vmul.f32 %v504, %v548
          %vm550 = vcmp.eq.f32.partialorder %v504, inf
          %v551 = vsel %vm550, %v504, %v549
          %vm552 = vcmp.eq.f32.partialorder %v504, 0.0
          %v553 = vand.u32 %v504, 2147483648
          %v554 = vsel %vm552, %v553, %v551
          %v555 = vrsqrt.pop %v505
          %v556 = vmul.f32 %v505, %v555
          %vm557 = vcmp.eq.f32.partialorder %v505, inf
          %v558 = vsel %vm557, %v505, %v556
          %vm559 = vcmp.eq.f32.partialorder %v505, 0.0
          %v560 = vand.u32 %v505, 2147483648
          %v561 = vsel %vm559, %v560, %v558
          %v562 = vmul.f32 %v482, %v512
          %v563 = vmul.f32 %v483, %v519
          %v564 = vmul.f32 %v484, %v526
          %v565 = vmul.f32 %v485, %v533
          %v566 = vmul.f32 %v486, %v540
          %v567 = vmul.f32 %v487, %v547
          %v568 = vmul.f32 %v488, %v554
          %v569 = vmul.f32 %v489, %v561
          %v570 = vmul.f32 %v562, %v562
          %v571 = vmul.f32 %v563, %v563
          %v572 = vmul.f32 %v564, %v564
          %v573 = vmul.f32 %v565, %v565
          %v574 = vmul.f32 %v566, %v566
          %v575 = vmul.f32 %v567, %v567
          %v576 = vmul.f32 %v568, %v568
          %v577 = vmul.f32 %v569, %v569
          %v578 = vsel %vm429, %v570, 0.0
          %579 = vadd.xlane.f32.xlu0 %v578
          %v580 = vpop.xlane.xlu0 %579
          %v581 = vsel %vm429, %v571, 0.0
          %582 = vadd.xlane.f32.xlu0 %v581
          %v583 = vpop.xlane.xlu0 %582
          %v584 = vsel %vm429, %v572, 0.0
          %585 = vadd.xlane.f32.xlu0 %v584
          %v586 = vpop.xlane.xlu0 %585
          %v587 = vsel %vm429, %v573, 0.0
          %588 = vadd.xlane.f32.xlu0 %v587
          %v589 = vpop.xlane.xlu0 %588
          %v590 = vsel %vm429, %v574, 0.0
          %591 = vadd.xlane.f32.xlu0 %v590
          %v592 = vpop.xlane.xlu0 %591
          %v593 = vsel %vm429, %v575, 0.0
          %594 = vadd.xlane.f32.xlu0 %v593
          %v595 = vpop.xlane.xlu0 %594
          %v596 = vsel %vm429, %v576, 0.0
          %597 = vadd.xlane.f32.xlu0 %v596
          %v598 = vpop.xlane.xlu0 %597
          %v599 = vsel %vm429, %v577, 0.0
          %600 = vadd.xlane.f32.xlu0 %v599
          %v601 = vpop.xlane.xlu0 %600
          %v602 = vadd.f32 %v580, %v583
          %v603 = vadd.f32 %v602, %v586
          %v604 = vadd.f32 %v603, %v589
          %v605 = vadd.f32 %v604, %v592
          %v606 = vadd.f32 %v605, %v595
          %v607 = vadd.f32 %v606, %v598
          %v608 = vadd.f32 %v607, %v601
          %v609 = vrot.slane %v608, 4
          %v610 = vadd.f32 %v608, %v609
          %v611 = vrot.slane %v610, 2
          %v612 = vadd.f32 %v610, %v611
          %v613 = vrot.slane %v612, 1
          %v614 = vadd.f32 %v612, %v613
          %v615 = vrsqrt.pop %v614
          %v616 = vmul.f32 %v614, %v615
          %vm617 = vcmp.eq.f32.partialorder %v614, inf
          %v618 = vsel %vm617, %v614, %v616
          %vm619 = vcmp.eq.f32.partialorder %v614, 0.0
          %v620 = vand.u32 %v614, 2147483648
          %v621 = vsel %vm619, %v620, %v618
          %v622 = vmax.f32 %v621, 1e-12
          %v623 = vrcp.pop %v622
          %v624 = vmul.f32 1.0, %v623
          %v625 = vmul.f32 %v562, %v624
          %v626 = vmul.f32 %v563, %v624
          %v627 = vmul.f32 %v564, %v624
          %v628 = vmul.f32 %v565, %v624
          %v629 = vmul.f32 %v566, %v624
          %v630 = vmul.f32 %v567, %v624
          %v631 = vmul.f32 %v568, %v624
          %v632 = vmul.f32 %v569, %v624
          %633 = vst.msk [vmem:[%s246] sm:$0xff] %vm429, %v625
          %634 = vst.msk [vmem:[%s246 + $0x8] sm:$0xff] %vm429, %v626
          %635 = vst.msk [vmem:[%s246 + $0x10] sm:$0xff] %vm429, %v627
          %636 = vst.msk [vmem:[%s246 + $0x18] sm:$0xff] %vm429, %v628
          %637 = vst.msk [vmem:[%s246 + $0x20] sm:$0xff] %vm429, %v629
          %638 = vst.msk [vmem:[%s246 + $0x28] sm:$0xff] %vm429, %v630
          %639 = vst.msk [vmem:[%s246 + $0x30] sm:$0xff] %vm429, %v631
          %640 = vst.msk [vmem:[%s246 + $0x38] sm:$0xff] %vm429, %v632
        $region59: #{tpu_custom_call.1} parent=46 // pred_fallthru
          _
        %p641 = scmp.lt.s32.totalorder %s17, 1
        %s642 = scalar_select %p641, %s17, 1
        %s643 = smul.addr %s642, 8
        %s644 = smul.addr %s643, 8
        %s645 = scalar_lea.vmem %s2, %s644
        // Predicated region
        $region60: #{tpu_custom_call.1} parent=46 // pred_check
          %p646 = pneg %p99
        $region61: #{tpu_custom_call.1} parent=46 // pred_check_branch
          %648 = sbr.rel (%p646) target = $region63
        $region62: #{tpu_custom_call.1} parent=46 // pred_region
          _
        $region63: #{tpu_custom_call.1} parent=46 // pred_fallthru
          _
      $region47: #{tpu_custom_call.1} parent=5 // pred_fallthru
        _
      %p649 = scmp.le.s32.totalorder 2, %s8
      // Predicated region
      $region64: #{tpu_custom_call.1} parent=5 // pred_check
        %p650 = pneg %p649
      $region65: #{tpu_custom_call.1} parent=5 // pred_check_branch
        %652 = sbr.rel (%p650) target = $region67
      $region66: #{tpu_custom_call.1} parent=5 // pred_region
        %s653 = ssub.s32 %s8, 2
        // Predicated region
        $region68: #{tpu_custom_call.1} parent=66 // pred_check
          %p654 = pneg %p105
        $region69: #{tpu_custom_call.1} parent=66 // pred_check_branch
          %656 = sbr.rel (%p654) target = $region71
        $region70: #{tpu_custom_call.1} parent=66 // pred_region
          %p657 = scmp.lt.s32.totalorder %s19, 1
          %s658 = scalar_select %p657, %s19, 1
          %s659 = smul.addr %s658, 8
          %s660 = smul.addr %s659, 8
          %s661 = scalar_lea.vmem %s2, %s660
        $region71: #{tpu_custom_call.1} parent=66 // pred_fallthru
          _
      $region67: #{tpu_custom_call.1} parent=5 // pred_fallthru
        _
    $region6: #{tpu_custom_call.1} parent=1 // loop_footer
      %s12 = sadd.s32 1, %s8
    $region7: #{tpu_custom_call.1} parent=1 // loop_footer_branch
      %7 = sbr.rel target = $region3
    $region8: #{tpu_custom_call.1} parent=1 // loop_exit
      _

</llo_original>
